<compile_context>
chip_gen: v7x
topology: tpu7x:2x2x1
jax: 0.10.0
libtpu: 0.0.40
codegen_flags: <defaults>
</compile_context>

<pallas_src>
import functools
from typing import NamedTuple

import jax
import jax.numpy as jnp
from jax.experimental import pallas as pl
from jax.experimental.pallas import tpu as pltpu


def _round_up(x: int, m: int) -> int:
    return (x + m - 1) // m * m


def _decoder_kernel(z_ref, w1_ref, b1_ref, wh_ref, bh_ref, mean_ref, std_ref):
    """One batch tile of the decoder forward pass.

    z_ref   : [TB, L]     bf16  latent samples (batch-padded only)
    w1_ref  : [L, Hp]     bf16  first-layer weight (resident)
    b1_ref  : [1, Hp]     f32   first-layer bias
    wh_ref  : [Hp, 2*Dp]  bf16  fused [W_mu | W_sigma] head weight (resident)
    bh_ref  : [1, 2*Dp]   f32   fused [b_mu | b_sigma] head bias
    mean_ref: [TB, Dp]    bf16  Gaussian mean
    std_ref : [TB, Dp]    bf16  Gaussian std
    """
    dp = mean_ref.shape[-1]  # multiple of 128 -> both stores are lane-dense

    # Layer 1: bf16 MXU matmul with f32 accumulate; bias + ReLU in f32 on VPU.
    h = jnp.dot(z_ref[...], w1_ref[...], preferred_element_type=jnp.float32)
    h = jnp.maximum(h + b1_ref[...], 0.0)

    # Fused heads: one wide, lane-dense matmul instead of two narrow ones.
    # (Keep the contraction in f32 instead of bf16 if downstream log-prob is
    # sensitive to bf16 rounding of large-magnitude sigma logits.)
    y = jnp.dot(h.astype(jnp.bfloat16), wh_ref[...],
                preferred_element_type=jnp.float32)
    y = y + bh_ref[...]

    # Splits land exactly on a 128-lane tile boundary -> unmasked stores.
    mean_ref[...] = y[:, :dp].astype(mean_ref.dtype)
    std_ref[...] = jnp.exp(y[:, dp:]).astype(std_ref.dtype)  # exp on the EUP, f32


class PackedDecoderParams(NamedTuple):
    """Pre-padded, pre-cast decoder parameters (build ONCE, reuse per call)."""
    w1: jax.Array   # [L, Hp]     bf16
    b1: jax.Array   # [1, Hp]     f32
    wh: jax.Array   # [Hp, 2*Dp]  bf16  == [W_mu | W_sigma]
    bh: jax.Array   # [1, 2*Dp]   f32   == [b_mu | b_sigma]


def pack_decoder_params(params) -> PackedDecoderParams:
    """One-time packing/padding of the decoder weights.

    Keep the result around: rebuilding these padded copies on every forward
    call costs more wall-clock than the kernel itself for a decoder this size.
    """
    w1, b1 = params["w1"], params["b1"]
    wm, bm = params["w_mu"], params["b_mu"]
    ws, bs = params["w_sigma"], params["b_sigma"]

    L, H = w1.shape
    D = wm.shape[1]
    # Hidden dim lives on-chip only: pad to the v6e/v7x MXU depth (256) when it
    # matters; 128 is already optimal for small H and for the v5e 128x128 MXU.
    Hp = 128 if H <= 128 else _round_up(H, 256)
    Dp = _round_up(max(D, 128), 128)

    w1p = jnp.zeros((L, Hp), jnp.bfloat16).at[:, :H].set(w1.astype(jnp.bfloat16))
    b1p = jnp.zeros((1, Hp), jnp.float32).at[0, :H].set(b1.astype(jnp.float32))
    wh = jnp.zeros((Hp, 2 * Dp), jnp.bfloat16)
    wh = wh.at[:H, :D].set(wm.astype(jnp.bfloat16))
    wh = wh.at[:H, Dp:Dp + D].set(ws.astype(jnp.bfloat16))
    bh = jnp.zeros((1, 2 * Dp), jnp.float32)
    bh = bh.at[0, :D].set(bm.astype(jnp.float32))
    bh = bh.at[0, Dp:Dp + D].set(bs.astype(jnp.float32))
    return PackedDecoderParams(w1p, b1p, wh, bh)


def _vmem_budget_bytes() -> int:
    """Usable VMEM budget: physical capacity minus >= 25% compiler headroom."""
    try:
        cap = int(pltpu.get_tpu_info().vmem_capacity_bytes)
    except Exception:
        cap = 64 * 1024 * 1024  # assume smallest (v7x per-TC) if query fails
    return cap * 3 // 4         # 48 MiB on v7x, 96 MiB on v5e/v6e


def _vmem_bytes(tb: int, L: int, Hp: int, Dp: int) -> int:
    """VMEM needed by the pallas_call.  Pallas double-buffers every operand by
    default — including the resident weights — so count 2x everywhere."""
    resident = 2 * (L * Hp * 2 + Hp * 2 * Dp * 2 + Hp * 4 + 2 * Dp * 4)
    streamed = 2 * (tb * L * 2 + 2 * tb * Dp * 2)  # z in + (mean, std) out, bf16
    return resident + streamed


def decoder_forward(z, packed: PackedDecoderParams, *, input_dim: int,
                    batch_tile=None):
    """Decoder forward as a single batch-gridded Pallas call.

    Returns (mean, std) in bf16 — parameters of the Gaussian p(x|z).
    """
    B, L = z.shape
    Hp = packed.w1.shape[1]
    Dp = packed.wh.shape[1] // 2
    D = input_dim

    budget = _vmem_budget_bytes()
    if batch_tile is None:
        # Bigger tiles on 128-MiB VMEM parts amortize the ~0.35 us/step overhead.
        batch_tile = 1024 if budget >= 64 * 1024 * 1024 else 512

    # Pick TB to minimise batch padding; keep >= 2 grid steps for large B so
    # both v7x TensorCores get work under dimension_semantics=("parallel",).
    n_tiles = max(1, pl.cdiv(B, batch_tile))
    if B >= 1024:
        n_tiles = max(n_tiles, 2)
    TB = max(8, _round_up(pl.cdiv(B, n_tiles), 8))
    while TB > 8 and _vmem_bytes(TB, L, Hp, Dp) > budget:
        TB = max(8, _round_up(TB // 2, 8))
    Bp = _round_up(B, TB)
    grid = (Bp // TB,)

    vmem_limit = int(min(max(2 * _vmem_bytes(TB, L, Hp, Dp), 32 * 1024 * 1024),
                         budget))

    # Only the batch dim of z is padded; the latent dim stays at L (a block
    # last-dim equal to the full array dim is legal), so no 16x HBM blow-up.
    zp = jnp.pad(z.astype(jnp.bfloat16), ((0, Bp - B), (0, 0)))

    mean_p, std_p = pl.pallas_call(
        _decoder_kernel,
        out_shape=(jax.ShapeDtypeStruct((Bp, Dp), jnp.bfloat16),
                   jax.ShapeDtypeStruct((Bp, Dp), jnp.bfloat16)),
        grid=grid,
        in_specs=[
            pl.BlockSpec((TB, L), lambda i: (i, 0)),        # z: streamed over batch
            pl.BlockSpec((L, Hp), lambda i: (0, 0)),        # W1: resident
            pl.BlockSpec((1, Hp), lambda i: (0, 0)),        # b1: resident
            pl.BlockSpec((Hp, 2 * Dp), lambda i: (0, 0)),   # [W_mu|W_sigma]: resident
            pl.BlockSpec((1, 2 * Dp), lambda i: (0, 0)),    # [b_mu|b_sigma]: resident
        ],
        out_specs=(pl.BlockSpec((TB, Dp), lambda i: (i, 0)),
                   pl.BlockSpec((TB, Dp), lambda i: (i, 0))),
        compiler_params=pltpu.CompilerParams(
            dimension_semantics=("parallel",),  # batch tiles shard across TCs
            vmem_limit_bytes=vmem_limit,
        ),
    )(zp, packed.w1, packed.b1, packed.wh, packed.bh)

    # Padded batch rows / padded output lanes contain plausible-looking garbage
    # (relu(b1), exp(b_sigma), ...) — always slice before use.
    return mean_p[:B, :D], std_p[:B, :D]


def init_decoder_params(key, latent_dim, hidden_dim, input_dim):
    """Deterministic synthetic parameter init (nn.Linear shapes, stored [in, out])."""
    k1, k2, k3 = jax.random.split(key, 3)
    s1 = 1.0 / jnp.sqrt(latent_dim)
    s2 = 1.0 / jnp.sqrt(hidden_dim)
    return {
        "w1":      jax.random.uniform(k1, (latent_dim, hidden_dim), jnp.float32, -s1, s1),
        "b1":      jnp.zeros((hidden_dim,), jnp.float32),
        "w_mu":    jax.random.uniform(k2, (hidden_dim, input_dim), jnp.float32, -s2, s2),
        "b_mu":    jnp.zeros((input_dim,), jnp.float32),
        "w_sigma": jax.random.uniform(k3, (hidden_dim, input_dim), jnp.float32, -s2, s2),
        "b_sigma": jnp.zeros((input_dim,), jnp.float32),
    }


def _reference_forward(z, params):
    """Plain-JAX f32 reference for correctness checking."""
    h = jnp.maximum(z @ params["w1"] + params["b1"], 0.0)
    mean = h @ params["w_mu"] + params["b_mu"]
    std = jnp.exp(h @ params["w_sigma"] + params["b_sigma"])
    return mean, std


if __name__ == "__main__":
    # Small shapes consistent with the module: latent_dim -> input_dim.
    batch, latent_dim, hidden_dim, input_dim = 8, 8, 32, 16

    key = jax.random.PRNGKey(0)
    kz, kp = jax.random.split(key)
    z = jax.random.normal(kz, (batch, latent_dim), jnp.float32)
    params = init_decoder_params(kp, latent_dim, hidden_dim, input_dim)

    packed = pack_decoder_params(params)          # once, outside the hot path
    fwd = jax.jit(decoder_forward, static_argnames=("input_dim", "batch_tile"))

    mean, std = fwd(z, packed, input_dim=input_dim)
    jax.block_until_ready((mean, std))

    ref_mean, ref_std = _reference_forward(z, params)
    assert mean.shape == (batch, input_dim) and std.shape == (batch, input_dim)
    # bf16 inputs/outputs with f32 MXU accumulation: compare against the f32
    # reference with a tolerance covering bf16 rounding of z / weights / h.
    assert jnp.allclose(mean.astype(jnp.float32), ref_mean, atol=5e-2, rtol=5e-2)
    assert jnp.allclose(std.astype(jnp.float32), ref_std, atol=5e-2, rtol=5e-2)
    assert bool(jnp.all(std > 0))

    print("KERNEL_OK")
</pallas_src>

<mosaic_0001>
module attributes {stable_mosaic.version = 11 : i64} {
  func.func @_decoder_kernel(%arg0: i32, %arg1: memref<8x8xbf16, #tpu.memory_space<vmem>>, %arg2: memref<8x128xbf16, #tpu.memory_space<vmem>>, %arg3: memref<1x128xf32, #tpu.memory_space<vmem>>, %arg4: memref<128x256xbf16, #tpu.memory_space<vmem>>, %arg5: memref<1x256xf32, #tpu.memory_space<vmem>>, %arg6: memref<8x128xbf16, #tpu.memory_space<vmem>>, %arg7: memref<8x128xbf16, #tpu.memory_space<vmem>>) attributes {dimension_semantics = [#tpu.dimension_semantics<parallel>], iteration_bounds = array<i64: 1>, scalar_prefetch = 0 : i64, scratch_operands = 0 : i64, tpu.core_type = #tpu.core_type<tc>, window_params = [{transform_indices = @transform_0, window_bounds = array<i64: 8, 8>}, {pipeline_mode = #tpu.pipeline_mode<synchronous>, transform_indices = @transform_1, window_bounds = array<i64: 8, 128>}, {pipeline_mode = #tpu.pipeline_mode<synchronous>, transform_indices = @transform_2, window_bounds = array<i64: 1, 128>}, {pipeline_mode = #tpu.pipeline_mode<synchronous>, transform_indices = @transform_3, window_bounds = array<i64: 128, 256>}, {pipeline_mode = #tpu.pipeline_mode<synchronous>, transform_indices = @transform_4, window_bounds = array<i64: 1, 256>}, {transform_indices = @transform_5, window_bounds = array<i64: 8, 128>}, {transform_indices = @transform_6, window_bounds = array<i64: 8, 128>}]} {
    %c0 = arith.constant 0 : index
    %c0_0 = arith.constant 0 : index
    %0 = vector.load %arg1[%c0, %c0_0] : memref<8x8xbf16, #tpu.memory_space<vmem>>, vector<8x8xbf16>
    %c0_1 = arith.constant 0 : index
    %c0_2 = arith.constant 0 : index
    %1 = vector.load %arg2[%c0_1, %c0_2] : memref<8x128xbf16, #tpu.memory_space<vmem>>, vector<8x128xbf16>
    %cst = arith.constant dense<0.000000e+00> : vector<8x128xf32>
    %2 = tpu.matmul %0, %1, %cst {dimension_numbers = #tpu.dot_dimension_numbers<[1], [0], [0], [1], [0, 0, 1, 1], [], []>} : vector<8x8xbf16>, vector<8x128xbf16>, vector<8x128xf32> -> vector<8x128xf32>
    %c0_3 = arith.constant 0 : index
    %c0_4 = arith.constant 0 : index
    %3 = vector.load %arg3[%c0_3, %c0_4] : memref<1x128xf32, #tpu.memory_space<vmem>>, vector<1x128xf32>
    %4 = vector.broadcast %3 : vector<1x128xf32> to vector<8x128xf32>
    %5 = arith.addf %2, %4 : vector<8x128xf32>
    %cst_5 = arith.constant 0.000000e+00 : f32
    %6 = vector.broadcast %cst_5 : f32 to vector<8x128xf32>
    %7 = arith.maximumf %5, %6 : vector<8x128xf32>
    %8 = arith.truncf %7 : vector<8x128xf32> to vector<8x128xbf16>
    %c0_6 = arith.constant 0 : index
    %c0_7 = arith.constant 0 : index
    %9 = vector.load %arg4[%c0_6, %c0_7] : memref<128x256xbf16, #tpu.memory_space<vmem>>, vector<128x256xbf16>
    %cst_8 = arith.constant dense<0.000000e+00> : vector<8x256xf32>
    %10 = tpu.matmul %8, %9, %cst_8 {dimension_numbers = #tpu.dot_dimension_numbers<[1], [0], [0], [1], [0, 0, 1, 1], [], []>} : vector<8x128xbf16>, vector<128x256xbf16>, vector<8x256xf32> -> vector<8x256xf32>
    %c0_9 = arith.constant 0 : index
    %c0_10 = arith.constant 0 : index
    %11 = vector.load %arg5[%c0_9, %c0_10] : memref<1x256xf32, #tpu.memory_space<vmem>>, vector<1x256xf32>
    %12 = vector.broadcast %11 : vector<1x256xf32> to vector<8x256xf32>
    %13 = arith.addf %10, %12 : vector<8x256xf32>
    %14 = vector.extract_strided_slice %13 {offsets = [0, 0], sizes = [8, 128], strides = [1, 1]} : vector<8x256xf32> to vector<8x128xf32>
    %15 = arith.truncf %14 : vector<8x128xf32> to vector<8x128xbf16>
    %c0_11 = arith.constant 0 : index
    %c0_12 = arith.constant 0 : index
    %16 = vector.load %arg6[%c0_11, %c0_12] : memref<8x128xbf16, #tpu.memory_space<vmem>>, vector<8x128xbf16>
    tpu.vector_store %arg6[%c0_11, %c0_12], %15 {strides = array<i32>} : memref<8x128xbf16, #tpu.memory_space<vmem>>, vector<8x128xbf16>,
    %17 = vector.extract_strided_slice %13 {offsets = [0, 128], sizes = [8, 128], strides = [1, 1]} : vector<8x256xf32> to vector<8x128xf32>
    %18 = math.exp %17 : vector<8x128xf32>
    %19 = arith.truncf %18 : vector<8x128xf32> to vector<8x128xbf16>
    %c0_13 = arith.constant 0 : index
    %c0_14 = arith.constant 0 : index
    %20 = vector.load %arg7[%c0_13, %c0_14] : memref<8x128xbf16, #tpu.memory_space<vmem>>, vector<8x128xbf16>
    tpu.vector_store %arg7[%c0_13, %c0_14], %19 {strides = array<i32>} : memref<8x128xbf16, #tpu.memory_space<vmem>>, vector<8x128xbf16>,
    return
  }
  func.func @transform_0(%arg0: i32) -> (i32, i32) {
    %c0_i32 = arith.constant 0 : i32
    %c0_i32_0 = arith.constant 0 : i32
    return %arg0, %c0_i32 : i32, i32
  }
  func.func @transform_1(%arg0: i32) -> (i32, i32) {
    %c0_i32 = arith.constant 0 : i32
    %c0_i32_0 = arith.constant 0 : i32
    %c0_i32_1 = arith.constant 0 : i32
    return %c0_i32, %c0_i32_0 : i32, i32
  }
  func.func @transform_2(%arg0: i32) -> (i32, i32) {
    %c0_i32 = arith.constant 0 : i32
    %c0_i32_0 = arith.constant 0 : i32
    %c0_i32_1 = arith.constant 0 : i32
    return %c0_i32, %c0_i32_0 : i32, i32
  }
  func.func @transform_3(%arg0: i32) -> (i32, i32) {
    %c0_i32 = arith.constant 0 : i32
    %c0_i32_0 = arith.constant 0 : i32
    %c0_i32_1 = arith.constant 0 : i32
    return %c0_i32, %c0_i32_0 : i32, i32
  }
  func.func @transform_4(%arg0: i32) -> (i32, i32) {
    %c0_i32 = arith.constant 0 : i32
    %c0_i32_0 = arith.constant 0 : i32
    %c0_i32_1 = arith.constant 0 : i32
    return %c0_i32, %c0_i32_0 : i32, i32
  }
  func.func @transform_5(%arg0: i32) -> (i32, i32) {
    %c0_i32 = arith.constant 0 : i32
    %c0_i32_0 = arith.constant 0 : i32
    return %arg0, %c0_i32 : i32, i32
  }
  func.func @transform_6(%arg0: i32) -> (i32, i32) {
    %c0_i32 = arith.constant 0 : i32
    %c0_i32_0 = arith.constant 0 : i32
    return %arg0, %c0_i32 : i32, i32
  }
}

</mosaic_0001>

<llo_original>
// kernel: decoder_forward.1
$region0: #{decoder_forward.1}
  #allocation0 [shape = 'u32[]', space=smem, size = 0x4, offset = 0x4, fixed_abs, tag = 'smem constant byte address 0x4 - core index']
  #allocation1 [shape = 'u32[144,128]{1,0:T(1,128)}', space=vmem, size = 0x12000, scoped, tag = 'internal scratch']
  %s0 = inlined_call_operand.vmem [shape: bf16[8,8], index: 0, kind: input, shape index: {}]
  %s1 = inlined_call_operand.vmem [shape: bf16[8,128], index: 1, kind: input, shape index: {}]
  %s2 = inlined_call_operand.vmem [shape: f32[1,128], index: 2, kind: input, shape index: {}]
  %s3 = inlined_call_operand.hbm [shape: bf16[128,256], index: 3, kind: input, shape index: {}]
  %s4 = inlined_call_operand.vmem [shape: f32[1,256], index: 4, kind: input, shape index: {}]
  %s5 = inlined_call_operand.hbm [shape: bf16[8,128], index: 5, kind: output, shape index: {0}]
  %s6 = inlined_call_operand.hbm [shape: bf16[8,128], index: 6, kind: output, shape index: {1}]
  %7 = xla_tuple %s5, %s6
  %s8 = sld [smem:[#allocation0]]
  $region42: #{decoder_forward.1} parent=0
    _
  %s10 = ssub.s32 1, %s8
  %s11 = scalar_select 0, %s10, %s8
  $region1: #{decoder_forward.1} parent=0
    #allocation2 [shape = 'u8[65536]{0}', space=vmem, size = 0x10000, scoped, tag = 'input window, operand 3, single buffered']
    #allocation3 [shape = 's32[1]{0}', space=sflag, size = 0x4, scoped, tag = 'scoped memory for decoder_forward.1']
    #allocation4 [shape = 's32[1]{0}', space=sflag, size = 0x4, scoped, tag = 'scoped memory for decoder_forward.1']
    #allocation5 [shape = 'u8[2048]{0}', space=vmem, size = 0x800, scoped, tag = 'output window, operand 0, single buffered']
    #allocation6 [shape = 'u8[2048]{0}', space=vmem, size = 0x800, scoped, tag = 'output window, operand 1, single buffered']
    #allocation7 [shape = 's32[1]{0}', space=sflag, size = 0x4, scoped, tag = 'scoped memory for decoder_forward.1']
    %12 = vsyncpa [#allocation3], 0
    %13 = vsyncpa [#allocation4], 0
    %14 = vsyncpa [#allocation7], 0
    // Predicated region
    $region2: #{decoder_forward.1} parent=1 // pred_check
      _
    $region3: #{decoder_forward.1} parent=1 // pred_check_branch
      %16 = sbr.rel (0) target = $region5
    $region4: #{decoder_forward.1} parent=1 // pred_region
      _
    $region5: #{decoder_forward.1} parent=1 // pred_fallthru
      _
    // Predicated region
    $region6: #{decoder_forward.1} parent=1 // pred_check
      _
    $region7: #{decoder_forward.1} parent=1 // pred_check_branch
      %18 = sbr.rel (0) target = $region9
    $region8: #{decoder_forward.1} parent=1 // pred_region
      _
    $region9: #{decoder_forward.1} parent=1 // pred_fallthru
      _
    // Predicated region
    $region10: #{decoder_forward.1} parent=1 // pred_check
      _
    $region11: #{decoder_forward.1} parent=1 // pred_check_branch
      %20 = sbr.rel (0) target = $region13
    $region12: #{decoder_forward.1} parent=1 // pred_region
      _
    $region13: #{decoder_forward.1} parent=1 // pred_fallthru
      _
    // Predicated region
    $region14: #{decoder_forward.1} parent=1 // pred_check
      _
    $region15: #{decoder_forward.1} parent=1 // pred_check_branch
      %22 = sbr.rel (0) target = $region17
    $region16: #{decoder_forward.1} parent=1 // pred_region
      %s24 = ssub.s32 2048, 2048
      %25 = vsyncadd [#allocation3], %s24
      %s26 = sshll.u32 [#allocation2], 4
      %s27 = int_to_ptr.vmem [resolvable:$true] %s26
      %32 = dma.hbm_to_vmem [thread:$0]  %s3, 2048, %s27, [#allocation3], 128, 128, 8
    $region17: #{decoder_forward.1} parent=1 // pred_fallthru
      _
    // Predicated region
    $region18: #{decoder_forward.1} parent=1 // pred_check
      _
    $region19: #{decoder_forward.1} parent=1 // pred_check_branch
      %34 = sbr.rel (0) target = $region21
    $region20: #{decoder_forward.1} parent=1 // pred_region
      _
    $region21: #{decoder_forward.1} parent=1 // pred_fallthru
      _
    // Predicated region
    $region22: #{decoder_forward.1} parent=1 // pred_check
      _
    $region23: #{decoder_forward.1} parent=1 // pred_check_branch
      %36 = sbr.rel (0) target = $region25
    $region24: #{decoder_forward.1} parent=1 // pred_region
      %37 = dma.done [#allocation3], 2048
    $region25: #{decoder_forward.1} parent=1 // pred_fallthru
      _
    %v39 = vld [vmem:[%s0] sm:$0xf]
    %v40 = vld [vmem:[%s1] sm:$0xf]
    %v41 = vld [vmem:[%s2] sm:$0x1]
    %v43 = vlaneseq
    %v44 = vshrl.u32 %v43, 7
    %v45 = vsub.s32 0, %v44
    %v46 = vrot.slane %v41, %v45
    %vm48 = vcmask 64512
    %v50 = vsel %vm48, %v39, 0
    %vm52 = vcmask 1043456
    %v54 = vsel %vm52, %v40, 0
    %56 = vmatprep.subr.bf16.mxu0 0
    %57 = vmatpush1.bf16.msra.mxu0 %v54
    %58 = vmatprep.subr.bf16.mxu0 0
    %59 = vmatpush1.bf16.msra.mxu0 0
    %60 = vmatprep.subr.bf16.mxu0 0
    %61 = vmatpush1.bf16.msra.mxu0 0
    %62 = vmatprep.subr.bf16.mxu0 0
    %63 = vmatpush1.bf16.msra.mxu0 0
    %64 = vmatprep.subr.bf16.mxu0 0
    %65 = vmatpush1.bf16.msra.mxu0 0
    %66 = vmatprep.subr.bf16.mxu0 0
    %67 = vmatpush1.bf16.msra.mxu0 0
    %68 = vmatprep.subr.bf16.mxu0 0
    %69 = vmatpush1.bf16.msra.mxu0 0
    %70 = vmatprep.subr.bf16.mxu0 0
    %71 = vmatpush1.bf16.msra.mxu0 0
    %72 = vmatprep.subr.bf16.mxu0 0
    %73 = vmatpush1.bf16.msra.mxu0 0
    %74 = vmatprep.subr.bf16.mxu0 0
    %75 = vmatpush1.bf16.msra.mxu0 0
    %76 = vmatprep.subr.bf16.mxu0 0
    %77 = vmatpush1.bf16.msra.mxu0 0
    %78 = vmatprep.subr.bf16.mxu0 0
    %79 = vmatpush1.bf16.msra.mxu0 0
    %80 = vmatprep.subr.bf16.mxu0 0
    %81 = vmatpush1.bf16.msra.mxu0 0
    %82 = vmatprep.subr.bf16.mxu0 0
    %83 = vmatpush1.bf16.msra.mxu0 0
    %84 = vmatprep.subr.bf16.mxu0 0
    %85 = vmatpush1.bf16.msra.mxu0 0
    %86 = vmatprep.subr.bf16.mxu0 0
    %87 = vmatpush1.bf16.msra.mxu0 0
    %88 = vmatprep.mubr.bf16.mxu0 0
    %89 = vmatmul.mubr.bf16.gmra.mrb[0].mxu0 %v50
    %v90 = vpop.f32.mrb[0].mxu0
    %v91 = vadd.f32 %v46, %v90
    %v92 = vpop.f32.mrb[0].mxu0
    %v93 = vpop.f32.mrb[0].mxu0
    %v94 = vpop.f32.mrb[0].mxu0
    %95 = vdwg.mxu0
    %v96 = vmax.f32 %v91, 0.0
    %v97 = vpack.c.bf16 %v96, %v96
    %v98 = vld [vmem:[#allocation2] sm:$0xff]
    %v99 = vld [vmem:[#allocation2 + $0x8] sm:$0xff]
    %v100 = vld [vmem:[#allocation2 + $0x10] sm:$0xff]
    %v101 = vld [vmem:[#allocation2 + $0x18] sm:$0xff]
    %v102 = vld [vmem:[#allocation2 + $0x20] sm:$0xff]
    %v103 = vld [vmem:[#allocation2 + $0x28] sm:$0xff]
    %v104 = vld [vmem:[#allocation2 + $0x30] sm:$0xff]
    %v105 = vld [vmem:[#allocation2 + $0x38] sm:$0xff]
    %v106 = vld [vmem:[#allocation2 + $0x40] sm:$0xff]
    %v107 = vld [vmem:[#allocation2 + $0x48] sm:$0xff]
    %v108 = vld [vmem:[#allocation2 + $0x50] sm:$0xff]
    %v109 = vld [vmem:[#allocation2 + $0x58] sm:$0xff]
    %v110 = vld [vmem:[#allocation2 + $0x60] sm:$0xff]
    %v111 = vld [vmem:[#allocation2 + $0x68] sm:$0xff]
    %v112 = vld [vmem:[#allocation2 + $0x70] sm:$0xff]
    %v113 = vld [vmem:[#allocation2 + $0x78] sm:$0xff]
    %v114 = vld [vmem:[%s4] sm:$0x3]
    %v116 = vlaneseq
    %v117 = vshrl.u32 %v116, 7
    %v118 = vsub.s32 0, %v117
    %v119 = vrot.slane %v114, %v118
    %v120 = vlaneseq
    %v121 = vshrl.u32 %v120, 7
    %v122 = vsub.s32 1, %v121
    %v123 = vrot.slane %v114, %v122
    %v142 = vunpack.c.l.b16 %v98
    %v143 = vunpack.c.h.b16 %v98
    %v144 = vunpack.c.l.b16 %v99
    %v145 = vunpack.c.h.b16 %v99
    %v146 = vunpack.c.l.b16 %v100
    %v147 = vunpack.c.h.b16 %v100
    %v148 = vunpack.c.l.b16 %v101
    %v149 = vunpack.c.h.b16 %v101
    %v150 = vunpack.c.l.b16 %v102
    %v151 = vunpack.c.h.b16 %v102
    %v152 = vunpack.c.l.b16 %v103
    %v153 = vunpack.c.h.b16 %v103
    %v154 = vunpack.c.l.b16 %v104
    %v155 = vunpack.c.h.b16 %v104
    %v156 = vunpack.c.l.b16 %v105
    %v157 = vunpack.c.h.b16 %v105
    %v158 = vunpack.c.l.b16 %v106
    %v159 = vunpack.c.h.b16 %v106
    %v160 = vunpack.c.l.b16 %v107
    %v161 = vunpack.c.h.b16 %v107
    %v162 = vunpack.c.l.b16 %v108
    %v163 = vunpack.c.h.b16 %v108
    %v164 = vunpack.c.l.b16 %v109
    %v165 = vunpack.c.h.b16 %v109
    %v166 = vunpack.c.l.b16 %v110
    %v167 = vunpack.c.h.b16 %v110
    %v168 = vunpack.c.l.b16 %v111
    %v169 = vunpack.c.h.b16 %v111
    %v170 = vunpack.c.l.b16 %v112
    %v171 = vunpack.c.h.b16 %v112
    %v172 = vunpack.c.l.b16 %v113
    %v173 = vunpack.c.h.b16 %v113
    %v174 = vpack.c.b16 %v144, %v142
    %v175 = vpack.c.b16 %v145, %v143
    %v176 = vpack.c.b16 %v148, %v146
    %v177 = vpack.c.b16 %v149, %v147
    %v178 = vpack.c.b16 %v152, %v150
    %v179 = vpack.c.b16 %v153, %v151
    %v180 = vpack.c.b16 %v156, %v154
    %v181 = vpack.c.b16 %v157, %v155
    %v182 = vpack.c.b16 %v160, %v158
    %v183 = vpack.c.b16 %v161, %v159
    %v184 = vpack.c.b16 %v164, %v162
    %v185 = vpack.c.b16 %v165, %v163
    %v186 = vpack.c.b16 %v168, %v166
    %v187 = vpack.c.b16 %v169, %v167
    %v188 = vpack.c.b16 %v172, %v170
    %v189 = vpack.c.b16 %v173, %v171
    %206 = vmatprep.subr.bf16.mxu0 %v175
    %207 = vmatpush1.bf16.msra.mxu0 %v174
    %208 = vmatprep.subr.bf16.mxu0 %v177
    %209 = vmatpush1.bf16.msra.mxu0 %v176
    %210 = vmatprep.subr.bf16.mxu0 %v179
    %211 = vmatpush1.bf16.msra.mxu0 %v178
    %212 = vmatprep.subr.bf16.mxu0 %v181
    %213 = vmatpush1.bf16.msra.mxu0 %v180
    %214 = vmatprep.subr.bf16.mxu0 %v183
    %215 = vmatpush1.bf16.msra.mxu0 %v182
    %216 = vmatprep.subr.bf16.mxu0 %v185
    %217 = vmatpush1.bf16.msra.mxu0 %v184
    %218 = vmatprep.subr.bf16.mxu0 %v187
    %219 = vmatpush1.bf16.msra.mxu0 %v186
    %220 = vmatprep.subr.bf16.mxu0 %v189
    %221 = vmatpush1.bf16.msra.mxu0 %v188
    %222 = vmatprep.subr.bf16.mxu0 0
    %223 = vmatpush1.bf16.msra.mxu0 0
    %224 = vmatprep.subr.bf16.mxu0 0
    %225 = vmatpush1.bf16.msra.mxu0 0
    %226 = vmatprep.subr.bf16.mxu0 0
    %227 = vmatpush1.bf16.msra.mxu0 0
    %228 = vmatprep.subr.bf16.mxu0 0
    %229 = vmatpush1.bf16.msra.mxu0 0
    %230 = vmatprep.subr.bf16.mxu0 0
    %231 = vmatpush1.bf16.msra.mxu0 0
    %232 = vmatprep.subr.bf16.mxu0 0
    %233 = vmatpush1.bf16.msra.mxu0 0
    %234 = vmatprep.subr.bf16.mxu0 0
    %235 = vmatpush1.bf16.msra.mxu0 0
    %236 = vmatprep.subr.bf16.mxu0 0
    %237 = vmatpush1.bf16.msra.mxu0 0
    %238 = vmatprep.mubr.bf16.mxu0 0
    %239 = vmatmul.mubr.bf16.gmra.mrb[0].mxu0 %v97
    %v240 = vpop.f32.mrb[0].mxu0
    %v241 = vadd.f32 %v119, %v240
    %v242 = vpop.f32.mrb[0].mxu0
    %v243 = vadd.f32 %v123, %v242
    %v244 = vpop.f32.mrb[0].mxu0
    %v245 = vpop.f32.mrb[0].mxu0
    %246 = vdwg.mxu0
    %v247 = vpack.c.bf16 %v241, %v241
    %248 = vst [vmem:[#allocation5] sm:$0xf] %v247
    %v249 = vmul.f32 %v243, 1.442695
    %v250 = vpow.pop %v249
    %v251 = vpack.c.bf16 %v250, %v250
    %252 = vst [vmem:[#allocation6] sm:$0xf] %v251
    // Predicated region
    $region26: #{decoder_forward.1} parent=1 // pred_check
      _
    $region27: #{decoder_forward.1} parent=1 // pred_check_branch
      %254 = sbr.rel (0) target = $region29
    $region28: #{decoder_forward.1} parent=1 // pred_region
      %s256 = ssub.s32 64, 64
      %257 = vsyncadd [#allocation4], %s256
      %s259 = sshll.u32 [#allocation5], 4
      %s260 = int_to_ptr.vmem [resolvable:$true] %s259
      %262 = dma.vmem_to_hbm [thread:$0]  %s260, 64, %s5, [#allocation4]
    $region29: #{decoder_forward.1} parent=1 // pred_fallthru
      _
    // Predicated region
    $region30: #{decoder_forward.1} parent=1 // pred_check
      _
    $region31: #{decoder_forward.1} parent=1 // pred_check_branch
      %264 = sbr.rel (0) target = $region33
    $region32: #{decoder_forward.1} parent=1 // pred_region
      %s266 = ssub.s32 64, 64
      %267 = vsyncadd [#allocation7], %s266
      %s269 = sshll.u32 [#allocation6], 4
      %s270 = int_to_ptr.vmem [resolvable:$true] %s269
      %272 = dma.vmem_to_hbm [thread:$0]  %s270, 64, %s6, [#allocation7]
    $region33: #{decoder_forward.1} parent=1 // pred_fallthru
      _
    // Predicated region
    $region34: #{decoder_forward.1} parent=1 // pred_check
      _
    $region35: #{decoder_forward.1} parent=1 // pred_check_branch
      %274 = sbr.rel (0) target = $region37
    $region36: #{decoder_forward.1} parent=1 // pred_region
      %275 = dma.done [#allocation4], 64
    $region37: #{decoder_forward.1} parent=1 // pred_fallthru
      _
    // Predicated region
    $region38: #{decoder_forward.1} parent=1 // pred_check
      _
    $region39: #{decoder_forward.1} parent=1 // pred_check_branch
      %277 = sbr.rel (0) target = $region41
    $region40: #{decoder_forward.1} parent=1 // pred_region
      %278 = dma.done [#allocation7], 64
    $region41: #{decoder_forward.1} parent=1 // pred_fallthru
      _
    %279 = vsyncpa [#allocation3], 1
    %280 = vsyncpa [#allocation4], 1
    %281 = vsyncpa [#allocation7], 1

</llo_original>
